<compile_context>
chip_gen: v5e
topology: v5e:2x2
jax: 0.10.0
libtpu: 0.0.40
codegen_flags: <defaults>
</compile_context>

<pallas_src>
import functools

import jax
import jax.numpy as jnp
from jax.experimental import pallas as pl
from jax.experimental.pallas import tpu as pltpu


def _ce_kernel(logits_ref, tgt_ref, loss_ref, cnt_ref, *, c, tile, p_total,
               tiles_per_split, ignore_index):
    """Per-tile cross-entropy.

    logits_ref: (1, C, T)  logits for one image, one pixel tile
    tgt_ref:    (1, 1, T)  int32 target class per pixel
    loss_ref:   (1, 1, T)  f32 per-lane NLL accumulator (resident across axis 2)
    cnt_ref:    (1, 1, T)  f32 per-lane valid-pixel count accumulator
    """
    j = pl.program_id(2)

    @pl.when(j == 0)
    def _():
        loss_ref[...] = jnp.zeros_like(loss_ref)
        cnt_ref[...] = jnp.zeros_like(cnt_ref)

    x = logits_ref[...].astype(jnp.float32)          # (1, C, T), f32 math
    t = tgt_ref[...]                                 # (1, 1, T) int32

    # Numerically-stable logsumexp over the class (sublane) axis.
    m = jnp.max(x, axis=1, keepdims=True)                                   # (1, 1, T)
    lse = m + jnp.log(jnp.sum(jnp.exp(x - m), axis=1, keepdims=True))       # (1, 1, T)

    # Gather the logit at the target class via a broadcast one-hot select.
    # Class iota kept as (1, C, 1): the compare broadcasts, no full-tile iota temp.
    cls = jax.lax.broadcasted_iota(jnp.int32, (1, c, 1), 1)                 # (1, C, 1)
    tgt_logit = jnp.sum(jnp.where(cls == t, x, 0.0), axis=1, keepdims=True) # (1, 1, T)

    nll = lse - tgt_logit                                                   # (1, 1, T)

    # PyTorch ignore_index semantics: ignored pixels contribute neither to the
    # numerator nor to the denominator of the mean.
    valid = t != ignore_index
    if p_total % tile != 0:
        # Ragged last tile: mask lanes past the true pixel count (OOB reads are junk).
        global_tile = pl.program_id(1) * tiles_per_split + j
        lane = jax.lax.broadcasted_iota(jnp.int32, (1, 1, tile), 2)
        valid = valid & (global_tile * tile + lane < p_total)

    loss_ref[...] += jnp.where(valid, nll, 0.0)
    cnt_ref[...] += valid.astype(jnp.float32)


def _plan_tiles(p, c, itemsize, tile_override):
    """Pick a lane-aligned pixel tile and a matching scoped-VMEM limit.

    Budgets against the *padded* VMEM footprint: C rounded up to the dtype sublane
    tile, x2 for pipeline double-buffering, plus target and accumulator blocks.
    """
    sub = 8 * (4 // max(1, itemsize))            # sublane tile: 8 (f32) / 16 (bf16)
    padded_c = -(-c // sub) * sub

    try:
        info = pltpu.get_tpu_info()
        vmem_cap = int(getattr(info, "vmem_capacity_bytes", 64 << 20))
    except Exception:  # pragma: no cover - CPU / interpret fallback
        vmem_cap = 64 << 20

    if vmem_cap <= (64 << 20):                   # v7x: 64 MiB physical per TC
        buf_budget, limit_cap = 8 << 20, 48 << 20
    else:                                        # v5e / v6e: 128 MiB physical
        buf_budget, limit_cap = 12 << 20, 64 << 20

    if tile_override is not None:
        tile = int(tile_override)
    else:
        cap = buf_budget // (padded_c * itemsize)
        cap = max(128, cap - cap % 128)
        tile = p if p <= 128 else min(cap, (p // 128) * 128)

    working = (2 * padded_c * tile * itemsize    # logits blocks (double-buffered)
               + 2 * 8 * tile * 4                # int32 target blocks (8-sublane pad)
               + 2 * 2 * 8 * tile * 4)           # two f32 accumulator blocks
    vmem_limit = int(min(limit_cap, max(working + (4 << 20), 16 << 20)))
    return tile, vmem_limit


@functools.partial(jax.jit, static_argnames=("tile_pix", "pixel_split", "ignore_index"))
def cross_entropy_pallas(prediction, target, tile_pix=None, pixel_split=None,
                         ignore_index=-100):
    """prediction: (N, C, H, W) float logits (f32 or bf16, consumed as-is);
    target: (N, 1, H, W) or (N, H, W) integer class indices (pass int32 so the
    wrapper astype is a no-op).

    Matches nn.CrossEntropyLoss(weight=None, reduction='mean', ignore_index=-100)
    applied to (prediction, target.squeeze()).
    """
    n, c, h, w = prediction.shape
    p = h * w
    itemsize = jnp.dtype(prediction.dtype).itemsize

    # Free (contiguous) reshapes only -- no HBM transpose, no dtype upcast.
    logits = prediction.reshape(n, c, p)                 # (N, C, P): classes on sublanes
    tgt = target.reshape(n, 1, p)                        # (N, 1, P): pixels on lanes
    if tgt.dtype != jnp.int32:                           # no-op when caller passes int32
        tgt = tgt.astype(jnp.int32)

    tile, vmem_limit = _plan_tiles(p, c, itemsize, tile_pix)
    if tile != p:
        assert tile % 128 == 0, "tile_pix must be a multiple of 128 (or equal H*W)"
    num_tiles = -(-p // tile)

    # Optional parallel pixel split (keeps both v7x TensorCores busy when N is small).
    split = pixel_split
    if split is None:
        split = 2 if (n == 1 and num_tiles % 2 == 0) else 1
    if split < 1 or num_tiles % split != 0:
        split = 1
    tps = num_tiles // split

    kernel = functools.partial(
        _ce_kernel, c=c, tile=tile, p_total=p, tiles_per_split=tps,
        ignore_index=ignore_index)

    loss_part, cnt_part = pl.pallas_call(
        kernel,
        out_shape=(jax.ShapeDtypeStruct((n * split, 1, tile), jnp.float32),
                   jax.ShapeDtypeStruct((n * split, 1, tile), jnp.float32)),
        grid_spec=pltpu.PrefetchScalarGridSpec(
            num_scalar_prefetch=0,
            grid=(n, split, tps),
            in_specs=[
                pl.BlockSpec((1, c, tile), lambda i, s, j: (i, 0, s * tps + j)),
                pl.BlockSpec((1, 1, tile), lambda i, s, j: (i, 0, s * tps + j)),
            ],
            out_specs=[
                pl.BlockSpec((1, 1, tile), lambda i, s, j: (i * split + s, 0, 0)),
                pl.BlockSpec((1, 1, tile), lambda i, s, j: (i * split + s, 0, 0)),
            ],
        ),
        compiler_params=pltpu.CompilerParams(
            dimension_semantics=("parallel", "parallel", "arbitrary"),
            vmem_limit_bytes=vmem_limit,
        ),
    )(logits, tgt)

    # weight=None, reduction='mean': sum of per-pixel NLL over valid targets divided
    # by the number of valid (non-ignored) targets.
    # TODO(synk): per-class weight tensor (weight != None) not implemented.
    return (jnp.sum(loss_part) / jnp.sum(cnt_part)).astype(jnp.float32)


def cross_entropy_ref(prediction, target, ignore_index=-100):
    """Pure-JAX reference matching nn.CrossEntropyLoss (weight=None, mean)."""
    n, c, h, w = prediction.shape
    t = target.reshape(-1).astype(jnp.int32)
    logits = jnp.transpose(prediction, (0, 2, 3, 1)).reshape(-1, c).astype(jnp.float32)
    logp = jax.nn.log_softmax(logits, axis=-1)
    safe_t = jnp.where(t == ignore_index, 0, t)
    nll = -jnp.take_along_axis(logp, safe_t[:, None], axis=-1)[:, 0]
    valid = (t != ignore_index).astype(jnp.float32)
    return jnp.sum(nll * valid) / jnp.sum(valid)


if __name__ == "__main__":
    key = jax.random.PRNGKey(0)
    k1, k2, k3, k4 = jax.random.split(key, 4)

    # Primary shape implied by the module (segmentation-style logits + label map).
    N, C, H, W = 2, 4, 16, 16
    prediction = jax.random.normal(k1, (N, C, H, W), dtype=jnp.float32)
    target = jax.random.randint(k2, (N, 1, H, W), 0, C, dtype=jnp.int32)

    loss = cross_entropy_pallas(prediction, target)
    jax.block_until_ready(loss)
    ref = cross_entropy_ref(prediction, target)
    assert jnp.allclose(loss, ref, rtol=1e-5, atol=1e-5), (loss, ref)

    # Ragged pixel count (P = 13*13 = 169, not a multiple of 128) + ignore_index.
    N2, C2, H2, W2 = 2, 4, 13, 13
    pred2 = jax.random.normal(k3, (N2, C2, H2, W2), dtype=jnp.float32)
    tgt2 = jax.random.randint(k4, (N2, 1, H2, W2), 0, C2, dtype=jnp.int32)
    tgt2 = tgt2.at[0, 0, 0, :3].set(-100)            # a few ignored pixels
    loss2 = cross_entropy_pallas(pred2, tgt2)
    jax.block_until_ready(loss2)
    ref2 = cross_entropy_ref(pred2, tgt2)
    assert jnp.allclose(loss2, ref2, rtol=1e-5, atol=1e-5), (loss2, ref2)

    # bf16 logits consumed as-is (f32 math in-kernel).
    pred3 = prediction.astype(jnp.bfloat16)
    loss3 = cross_entropy_pallas(pred3, target)
    jax.block_until_ready(loss3)
    ref3 = cross_entropy_ref(pred3, target)
    assert jnp.allclose(loss3, ref3, rtol=2e-2, atol=2e-2), (loss3, ref3)

    print("KERNEL_OK")
</pallas_src>

<mosaic_0001>
module attributes {stable_mosaic.version = 11 : i64} {
  func.func @_ce_kernel(%arg0: i32, %arg1: i32, %arg2: i32, %arg3: memref<1x4x256xf32, #tpu.memory_space<vmem>>, %arg4: memref<1x1x256xi32, #tpu.memory_space<vmem>>, %arg5: memref<1x1x256xf32, #tpu.memory_space<vmem>>, %arg6: memref<1x1x256xf32, #tpu.memory_space<vmem>>) attributes {dimension_semantics = [#tpu.dimension_semantics<parallel>, #tpu.dimension_semantics<parallel>, #tpu.dimension_semantics<arbitrary>], iteration_bounds = array<i64: 2, 1, 1>, scalar_prefetch = 0 : i64, scratch_operands = 0 : i64, tpu.core_type = #tpu.core_type<tc>, window_params = [{transform_indices = @transform_0, window_bounds = array<i64: 1, 4, 256>}, {transform_indices = @transform_1, window_bounds = array<i64: 1, 1, 256>}, {transform_indices = @transform_2, window_bounds = array<i64: 1, 1, 256>}, {transform_indices = @transform_3, window_bounds = array<i64: 1, 1, 256>}]} {
    %c0_i32 = arith.constant 0 : i32
    %0 = arith.cmpi eq, %arg2, %c0_i32 : i32
    %1 = arith.extui %0 : i1 to i32
    %c0_i32_0 = arith.constant 0 : i32
    %2 = arith.cmpi ne, %1, %c0_i32_0 : i32
    scf.if %2 {
      %cst_22 = arith.constant 0.000000e+00 : f32
      %35 = vector.broadcast %cst_22 : f32 to vector<1x1x256xf32>
      %c0_23 = arith.constant 0 : index
      %c0_24 = arith.constant 0 : index
      %c0_25 = arith.constant 0 : index
      %36 = vector.load %arg5[%c0_23, %c0_24, %c0_25] : memref<1x1x256xf32, #tpu.memory_space<vmem>>, vector<1x1x256xf32>
      tpu.vector_store %arg5[%c0_23, %c0_24, %c0_25], %35 {strides = array<i32>} : memref<1x1x256xf32, #tpu.memory_space<vmem>>, vector<1x1x256xf32>,
      %cst_26 = arith.constant 0.000000e+00 : f32
      %37 = vector.broadcast %cst_26 : f32 to vector<1x1x256xf32>
      %c0_27 = arith.constant 0 : index
      %c0_28 = arith.constant 0 : index
      %c0_29 = arith.constant 0 : index
      %38 = vector.load %arg6[%c0_27, %c0_28, %c0_29] : memref<1x1x256xf32, #tpu.memory_space<vmem>>, vector<1x1x256xf32>
      tpu.vector_store %arg6[%c0_27, %c0_28, %c0_29], %37 {strides = array<i32>} : memref<1x1x256xf32, #tpu.memory_space<vmem>>, vector<1x1x256xf32>,
    } else {
    }
    %c0 = arith.constant 0 : index
    %c0_1 = arith.constant 0 : index
    %c0_2 = arith.constant 0 : index
    %3 = vector.load %arg3[%c0, %c0_1, %c0_2] : memref<1x4x256xf32, #tpu.memory_space<vmem>>, vector<1x4x256xf32>
    %c0_3 = arith.constant 0 : index
    %c0_4 = arith.constant 0 : index
    %c0_5 = arith.constant 0 : index
    %4 = vector.load %arg4[%c0_3, %c0_4, %c0_5] : memref<1x1x256xi32, #tpu.memory_space<vmem>>, vector<1x1x256xi32>
    %cst = arith.constant dense<0xFF800000> : vector<1x256xf32>
    %5 = vector.multi_reduction <maximumf>, %3, %cst [1] : vector<1x4x256xf32> to vector<1x256xf32>
    %6 = vector.shape_cast %5 : vector<1x256xf32> to vector<1x1x256xf32>
    %7 = vector.broadcast %6 : vector<1x1x256xf32> to vector<1x4x256xf32>
    %8 = arith.subf %3, %7 : vector<1x4x256xf32>
    %9 = math.exp %8 : vector<1x4x256xf32>
    %cst_6 = arith.constant dense<0.000000e+00> : vector<1x256xf32>
    %10 = vector.multi_reduction <add>, %9, %cst_6 [1] : vector<1x4x256xf32> to vector<1x256xf32>
    %11 = vector.shape_cast %10 : vector<1x256xf32> to vector<1x1x256xf32>
    %12 = math.log %11 : vector<1x1x256xf32>
    %13 = arith.addf %6, %12 : vector<1x1x256xf32>
    %14 = tpu.iota {dimensions = array<i32: 1>} : vector<1x4x1xi32>
    %15 = vector.broadcast %14 : vector<1x4x1xi32> to vector<1x4x256xi32>
    %16 = vector.broadcast %4 : vector<1x1x256xi32> to vector<1x4x256xi32>
    %17 = arith.cmpi eq, %15, %16 : vector<1x4x256xi32>
    %cst_7 = arith.constant 0.000000e+00 : f32
    %18 = vector.broadcast %cst_7 : f32 to vector<1x4x256xf32>
    %19 = arith.select %17, %3, %18 : vector<1x4x256xi1>, vector<1x4x256xf32>
    %cst_8 = arith.constant dense<0.000000e+00> : vector<1x256xf32>
    %20 = vector.multi_reduction <add>, %19, %cst_8 [1] : vector<1x4x256xf32> to vector<1x256xf32>
    %21 = vector.shape_cast %20 : vector<1x256xf32> to vector<1x1x256xf32>
    %22 = arith.subf %13, %21 : vector<1x1x256xf32>
    %c-100_i32 = arith.constant -100 : i32
    %23 = vector.broadcast %c-100_i32 : i32 to vector<1x1x256xi32>
    %24 = arith.cmpi ne, %4, %23 : vector<1x1x256xi32>
    %c0_9 = arith.constant 0 : index
    %c0_10 = arith.constant 0 : index
    %c0_11 = arith.constant 0 : index
    %25 = vector.load %arg5[%c0_9, %c0_10, %c0_11] : memref<1x1x256xf32, #tpu.memory_space<vmem>>, vector<1x1x256xf32>
    %cst_12 = arith.constant 0.000000e+00 : f32
    %26 = vector.broadcast %cst_12 : f32 to vector<1x1x256xf32>
    %27 = arith.select %24, %22, %26 : vector<1x1x256xi1>, vector<1x1x256xf32>
    %28 = arith.addf %25, %27 : vector<1x1x256xf32>
    %c0_13 = arith.constant 0 : index
    %c0_14 = arith.constant 0 : index
    %c0_15 = arith.constant 0 : index
    %29 = vector.load %arg5[%c0_13, %c0_14, %c0_15] : memref<1x1x256xf32, #tpu.memory_space<vmem>>, vector<1x1x256xf32>
    tpu.vector_store %arg5[%c0_13, %c0_14, %c0_15], %28 {strides = array<i32>} : memref<1x1x256xf32, #tpu.memory_space<vmem>>, vector<1x1x256xf32>,
    %c0_16 = arith.constant 0 : index
    %c0_17 = arith.constant 0 : index
    %c0_18 = arith.constant 0 : index
    %30 = vector.load %arg6[%c0_16, %c0_17, %c0_18] : memref<1x1x256xf32, #tpu.memory_space<vmem>>, vector<1x1x256xf32>
    %31 = arith.extui %24 : vector<1x1x256xi1> to vector<1x1x256xi32>
    %32 = arith.sitofp %31 : vector<1x1x256xi32> to vector<1x1x256xf32>
    %33 = arith.addf %30, %32 : vector<1x1x256xf32>
    %c0_19 = arith.constant 0 : index
    %c0_20 = arith.constant 0 : index
    %c0_21 = arith.constant 0 : index
    %34 = vector.load %arg6[%c0_19, %c0_20, %c0_21] : memref<1x1x256xf32, #tpu.memory_space<vmem>>, vector<1x1x256xf32>
    tpu.vector_store %arg6[%c0_19, %c0_20, %c0_21], %33 {strides = array<i32>} : memref<1x1x256xf32, #tpu.memory_space<vmem>>, vector<1x1x256xf32>,
    return
  }
  func.func @transform_0(%arg0: i32, %arg1: i32, %arg2: i32) -> (i32, i32, i32) {
    %c1_i32 = arith.constant 1 : i32
    %0 = arith.muli %arg1, %c1_i32 : i32
    %1 = arith.addi %0, %arg2 : i32
    %c0_i32 = arith.constant 0 : i32
    %c0_i32_0 = arith.constant 0 : i32
    return %arg0, %c0_i32, %1 : i32, i32, i32
  }
  func.func @transform_1(%arg0: i32, %arg1: i32, %arg2: i32) -> (i32, i32, i32) {
    %c1_i32 = arith.constant 1 : i32
    %0 = arith.muli %arg1, %c1_i32 : i32
    %1 = arith.addi %0, %arg2 : i32
    %c0_i32 = arith.constant 0 : i32
    %c0_i32_0 = arith.constant 0 : i32
    return %arg0, %c0_i32, %1 : i32, i32, i32
  }
  func.func @transform_2(%arg0: i32, %arg1: i32, %arg2: i32) -> (i32, i32, i32) {
    %c1_i32 = arith.constant 1 : i32
    %0 = arith.muli %arg0, %c1_i32 : i32
    %1 = arith.addi %0, %arg1 : i32
    %c0_i32 = arith.constant 0 : i32
    %c0_i32_0 = arith.constant 0 : i32
    %c0_i32_1 = arith.constant 0 : i32
    return %1, %c0_i32, %c0_i32_0 : i32, i32, i32
  }
  func.func @transform_3(%arg0: i32, %arg1: i32, %arg2: i32) -> (i32, i32, i32) {
    %c1_i32 = arith.constant 1 : i32
    %0 = arith.muli %arg0, %c1_i32 : i32
    %1 = arith.addi %0, %arg1 : i32
    %c0_i32 = arith.constant 0 : i32
    %c0_i32_0 = arith.constant 0 : i32
    %c0_i32_1 = arith.constant 0 : i32
    return %1, %c0_i32, %c0_i32_0 : i32, i32, i32
  }
}

</mosaic_0001>

<llo_original>
// kernel: cross_entropy_pallas.1
$region0: #{cross_entropy_pallas.1}
  #allocation0 [shape = 'u32[]', space=smem, size = 0x4, offset = 0x4, fixed_abs, tag = 'smem constant byte address 0x4 - core index']
  #allocation1 [shape = 'u32[72,128]{1,0:T(1,128)}', space=vmem, size = 0x9000, scoped, tag = 'internal scratch']
  %s0 = inlined_call_operand.vmem [shape: f32[2,4,256], index: 0, kind: input, shape index: {}]
  %s1 = inlined_call_operand.vmem [shape: s32[2,1,256], index: 1, kind: input, shape index: {}]
  %s2 = inlined_call_operand.vmem [shape: f32[2,1,256], index: 2, kind: output, shape index: {0}]
  %s3 = inlined_call_operand.vmem [shape: f32[2,1,256], index: 3, kind: output, shape index: {1}]
  %4 = xla_tuple %s2, %s3
  %s5 = sld [smem:[#allocation0]]
  $region53: #{cross_entropy_pallas.1} parent=0
    _
  %s7 = ssub.s32 1, %s5
  %s8 = scalar_select 0, %s7, %s5
  loop: start=0, step=1, limit=4
  $region2: #{cross_entropy_pallas.1} parent=0 // loop_pre_header
    _
  $region3: #{cross_entropy_pallas.1} parent=0 // loop_header
    %s10 = sphi 0, %s14
    %p11 = scmp.ge.s32.totalorder %s10, 4
    %s17 = sphi 0, %s36
    %s18 = sphi 0, %s32
    %s19 = sphi 0, %s28
    %s20 = sphi 0, %s17
    %s21 = sphi 0, %s18
    %s22 = sphi 0, %s19
    %s23 = sphi 0, %s20
    %s24 = sphi 0, %s21
    %s25 = sphi 0, %s22
    %s43 = sphi 0, %s45
    %s46 = sphi 0, %s43
    %s47 = sphi 0, %s46
    %s63 = sphi 0, %s47
    %s73 = sphi 0, %s75
    %s76 = sphi 0, %s73
    %s77 = sphi 0, %s76
    %s93 = sphi 0, %s77
    %s101 = sphi 0, %s103
    %s104 = sphi 0, %s101
    %s105 = sphi 0, %s104
    %s121 = sphi 0, %s105
    %s129 = sphi 0, %s131
    %s132 = sphi 0, %s129
    %s133 = sphi 0, %s132
    %s149 = sphi 0, %s133
  $region4: #{cross_entropy_pallas.1} parent=0 // loop_header_branch
    %13 = sbr.rel (%p11) target = $region8
  $region5: #{cross_entropy_pallas.1} parent=0 // loop_body
    %s15 = ssub.s32 %s10, 1
    %s16 = ssub.s32 %s10, 2
    %s26 = sadd.s32 1, %s19
    %p27 = scmp.ge.s32.totalorder %s26, 1
    %s28 = scalar_select %p27, 0, %s26
    %s29 = sadd.s32 1, %s18
    %s30 = scalar_select %p27, %s29, %s18
    %p31 = scmp.ge.s32.totalorder %s30, 1
    %s32 = scalar_select %p31, 0, %s30
    %s33 = sadd.s32 1, %s17
    %s34 = scalar_select %p31, %s33, %s17
    %p35 = scmp.ge.s32.totalorder %s34, 2
    %s36 = scalar_select %p35, 0, %s34
    %s37 = sadd.s32 %s18, %s19
    %s38 = sadd.s32 %s32, %s28
    %s39 = ssub.s32 %s17, %s36
    %s40 = ssub.s32 %s37, %s38
    %s41 = sor.u32 %s39, %s40
    %p42 = scmp.eq.s32.totalorder %s41, 0
    %s44 = sadd.s32 %s43, 1
    %s45 = scalar_select %p42, %s43, %s44
    %p48 = pneg %p42
    %p49 = scmp.eq.s32.totalorder %s10, 1
    %p50 = por %p48, %p49
    %p51 = scmp.ne.s32.totalorder %s43, %s46
    %p52 = scmp.eq.s32.totalorder %s10, 0
    %p53 = por %p51, %p52
    %p54 = scmp.ne.s32.totalorder %s43, %s46
    %p55 = scmp.eq.s32.totalorder %s15, 1
    %p56 = por %p54, %p55
    %p57 = scmp.ne.s32.totalorder %s46, %s47
    %p58 = scmp.eq.s32.totalorder %s15, 0
    %p59 = por %p57, %p58
    %p60 = scmp.ne.s32.totalorder %s46, %s47
    %p61 = scmp.eq.s32.totalorder %s16, 1
    %p62 = por %p60, %p61
    %p64 = scmp.ne.s32.totalorder %s47, %s63
    %p65 = scmp.eq.s32.totalorder %s16, 0
    %p66 = por %p64, %p65
    %s67 = sadd.s32 %s18, %s19
    %s68 = sadd.s32 %s32, %s28
    %s69 = ssub.s32 %s17, %s36
    %s70 = ssub.s32 %s67, %s68
    %s71 = sor.u32 %s69, %s70
    %p72 = scmp.eq.s32.totalorder %s71, 0
    %s74 = sadd.s32 %s73, 1
    %s75 = scalar_select %p72, %s73, %s74
    %p78 = pneg %p72
    %p79 = scmp.eq.s32.totalorder %s10, 1
    %p80 = por %p78, %p79
    %p81 = scmp.ne.s32.totalorder %s73, %s76
    %p82 = scmp.eq.s32.totalorder %s10, 0
    %p83 = por %p81, %p82
    %p84 = scmp.ne.s32.totalorder %s73, %s76
    %p85 = scmp.eq.s32.totalorder %s15, 1
    %p86 = por %p84, %p85
    %p87 = scmp.ne.s32.totalorder %s76, %s77
    %p88 = scmp.eq.s32.totalorder %s15, 0
    %p89 = por %p87, %p88
    %p90 = scmp.ne.s32.totalorder %s76, %s77
    %p91 = scmp.eq.s32.totalorder %s16, 1
    %p92 = por %p90, %p91
    %p94 = scmp.ne.s32.totalorder %s77, %s93
    %p95 = scmp.eq.s32.totalorder %s16, 0
    %p96 = por %p94, %p95
    %s97 = sadd.s32 %s17, %s18
    %s98 = sadd.s32 %s36, %s32
    %s99 = ssub.s32 %s97, %s98
    %p100 = scmp.eq.s32.totalorder %s99, 0
    %s102 = sadd.s32 %s101, 1
    %s103 = scalar_select %p100, %s101, %s102
    %p106 = pneg %p100
    %p107 = scmp.eq.s32.totalorder %s10, 1
    %p108 = por %p106, %p107
    %p109 = scmp.ne.s32.totalorder %s101, %s104
    %p110 = scmp.eq.s32.totalorder %s10, 0
    %p111 = por %p109, %p110
    %p112 = scmp.ne.s32.totalorder %s101, %s104
    %p113 = scmp.eq.s32.totalorder %s15, 1
    %p114 = por %p112, %p113
    %p115 = scmp.ne.s32.totalorder %s104, %s105
    %p116 = scmp.eq.s32.totalorder %s15, 0
    %p117 = por %p115, %p116
    %p118 = scmp.ne.s32.totalorder %s104, %s105
    %p119 = scmp.eq.s32.totalorder %s16, 1
    %p120 = por %p118, %p119
    %p122 = scmp.ne.s32.totalorder %s105, %s121
    %p123 = scmp.eq.s32.totalorder %s16, 0
    %p124 = por %p122, %p123
    %s125 = sadd.s32 %s17, %s18
    %s126 = sadd.s32 %s36, %s32
    %s127 = ssub.s32 %s125, %s126
    %p128 = scmp.eq.s32.totalorder %s127, 0
    %s130 = sadd.s32 %s129, 1
    %s131 = scalar_select %p128, %s129, %s130
    %p134 = pneg %p128
    %p135 = scmp.eq.s32.totalorder %s10, 1
    %p136 = por %p134, %p135
    %p137 = scmp.ne.s32.totalorder %s129, %s132
    %p138 = scmp.eq.s32.totalorder %s10, 0
    %p139 = por %p137, %p138
    %p140 = scmp.ne.s32.totalorder %s129, %s132
    %p141 = scmp.eq.s32.totalorder %s15, 1
    %p142 = por %p140, %p141
    %p143 = scmp.ne.s32.totalorder %s132, %s133
    %p144 = scmp.eq.s32.totalorder %s15, 0
    %p145 = por %p143, %p144
    %p146 = scmp.ne.s32.totalorder %s132, %s133
    %p147 = scmp.eq.s32.totalorder %s16, 1
    %p148 = por %p146, %p147
    %p150 = scmp.ne.s32.totalorder %s133, %s149
    %p151 = scmp.eq.s32.totalorder %s16, 0
    %p152 = por %p150, %p151
    %p153 = scmp.le.s32.totalorder 1, %s10
    %p154 = scmp.lt.s32.totalorder %s10, 3
    %p155 = pnand %p153, %p154
    %p156 = pneg %p155
    // Predicated region
    $region9: #{cross_entropy_pallas.1} parent=5 // pred_check
      _
    $region10: #{cross_entropy_pallas.1} parent=5 // pred_check_branch
      %158 = sbr.rel (%p155) target = $region12
    $region11: #{cross_entropy_pallas.1} parent=5 // pred_region
      %s159 = ssub.s32 %s10, 1
    $region12: #{cross_entropy_pallas.1} parent=5 // pred_fallthru
      _
    %p160 = scmp.lt.s32.totalorder %s10, 2
    // Predicated region
    $region13: #{cross_entropy_pallas.1} parent=5 // pred_check
      %p161 = pneg %p160
    $region14: #{cross_entropy_pallas.1} parent=5 // pred_check_branch
      %163 = sbr.rel (%p161) target = $region16
    $region15: #{cross_entropy_pallas.1} parent=5 // pred_region
      // Predicated region
      $region17: #{cross_entropy_pallas.1} parent=15 // pred_check
        %p164 = pneg %p53
      $region18: #{cross_entropy_pallas.1} parent=15 // pred_check_branch
        %166 = sbr.rel (%p164) target = $region20
      $region19: #{cross_entropy_pallas.1} parent=15 // pred_region
        %s167 = sadd.s32 %s18, %s19
        %s168 = smul.u32 2, %s167
        %p169 = scmp.lt.s32.totalorder %s17, 1
        %s170 = scalar_select %p169, %s17, 1
        %p171 = scmp.lt.s32.totalorder %s168, 1
        %s172 = scalar_select %p171, %s168, 1
        %s173 = smul.addr %s170, 2
        %s174 = sadd.s32 %s172, %s173
        %s175 = smul.addr %s174, 4
        %s176 = scalar_lea.vmem %s0, %s175
        %s177 = sadd.s32 %s18, %s19
        %s178 = smul.u32 2, %s177
      $region20: #{cross_entropy_pallas.1} parent=15 // pred_fallthru
        _
      // Predicated region
      $region21: #{cross_entropy_pallas.1} parent=15 // pred_check
        %p179 = pneg %p83
      $region22: #{cross_entropy_pallas.1} parent=15 // pred_check_branch
        %181 = sbr.rel (%p179) target = $region24
      $region23: #{cross_entropy_pallas.1} parent=15 // pred_region
        %s182 = sadd.s32 %s18, %s19
        %s183 = smul.u32 2, %s182
        %p184 = scmp.lt.s32.totalorder %s17, 1
        %s185 = scalar_select %p184, %s17, 1
        %p186 = scmp.lt.s32.totalorder %s183, 1
        %s187 = scalar_select %p186, %s183, 1
        %s188 = smul.addr %s185, 2
        %s189 = sadd.s32 %s187, %s188
        %s190 = scalar_lea.vmem %s1, %s189
        %s191 = sadd.s32 %s18, %s19
        %s192 = smul.u32 2, %s191
      $region24: #{cross_entropy_pallas.1} parent=15 // pred_fallthru
        _
    $region16: #{cross_entropy_pallas.1} parent=5 // pred_fallthru
      _
    %p193 = scmp.le.s32.totalorder 1, %s10
    %p194 = scmp.lt.s32.totalorder %s10, 3
    %p195 = pnand %p193, %p194
    %p196 = pneg %p195
    // Predicated region
    $region25: #{cross_entropy_pallas.1} parent=5 // pred_check
      _
    $region26: #{cross_entropy_pallas.1} parent=5 // pred_check_branch
      %198 = sbr.rel (%p195) target = $region28
    $region27: #{cross_entropy_pallas.1} parent=5 // pred_region
      %s199 = ssub.s32 %s10, 1
      %s200 = sadd.s32 %s21, %s22
      %s201 = smul.u32 2, %s200
      %p202 = scmp.lt.s32.totalorder %s20, 1
      %s203 = scalar_select %p202, %s20, 1
      %p204 = scmp.lt.s32.totalorder %s201, 1
      %s205 = scalar_select %p204, %s201, 1
      %s206 = smul.addr %s203, 2
      %s207 = sadd.s32 %s205, %s206
      %s208 = smul.addr %s207, 4
      %s209 = scalar_lea.vmem %s0, %s208
      %p210 = pneg %p59
      %p211 = pneg %p56
      %s212 = sadd.s32 %s21, %s22
      %s213 = smul.u32 2, %s212
      %p214 = scmp.lt.s32.totalorder %s20, 1
      %s215 = scalar_select %p214, %s20, 1
      %p216 = scmp.lt.s32.totalorder %s213, 1
      %s217 = scalar_select %p216, %s213, 1
      %s218 = smul.addr %s215, 2
      %s219 = sadd.s32 %s217, %s218
      %s220 = scalar_lea.vmem %s1, %s219
      %p221 = pneg %p89
      %p222 = pneg %p86
      %p223 = pneg %p117
      %p224 = pneg %p114
      %s225 = sadd.s32 %s20, %s21
      %p226 = scmp.lt.s32.totalorder %s225, 1
      %s227 = scalar_select %p226, %s225, 1
      %s228 = smul.addr %s227, 2
      %s229 = scalar_lea.vmem %s2, %s228
      %p230 = pneg %p145
      %p231 = pneg %p142
      %s232 = sadd.s32 %s20, %s21
      %p233 = scmp.lt.s32.totalorder %s232, 1
      %s234 = scalar_select %p233, %s232, 1
      %s235 = smul.addr %s234, 2
      %s236 = scalar_lea.vmem %s3, %s235
      %s237 = sadd.s32 %s21, %s22
      %s238 = smul.u32 2, %s237
      %p239 = scmp.lt.s32.totalorder %s20, 1
      %s240 = scalar_select %p239, %s20, 1
      %p241 = scmp.lt.s32.totalorder %s238, 1
      %s242 = scalar_select %p241, %s238, 1
      %s243 = smul.addr %s240, 2
      %s244 = sadd.s32 %s242, %s243
      %s245 = smul.addr %s244, 4
      %s246 = scalar_lea.vmem %s0, %s245
      %s247 = sadd.s32 %s21, %s22
      %s248 = smul.u32 2, %s247
      %s249 = sadd.s32 %s21, %s22
      %s250 = smul.u32 2, %s249
      %p251 = scmp.lt.s32.totalorder %s20, 1
      %s252 = scalar_select %p251, %s20, 1
      %p253 = scmp.lt.s32.totalorder %s250, 1
      %s254 = scalar_select %p253, %s250, 1
      %s255 = smul.addr %s252, 2
      %s256 = sadd.s32 %s254, %s255
      %s257 = scalar_lea.vmem %s1, %s256
      %s258 = sadd.s32 %s21, %s22
      %s259 = smul.u32 2, %s258
      %s260 = sadd.s32 %s20, %s21
      %p261 = scmp.lt.s32.totalorder %s260, 1
      %s262 = scalar_select %p261, %s260, 1
      %s263 = smul.addr %s262, 2
      %s264 = scalar_lea.vmem %s2, %s263
      %s265 = sadd.s32 %s20, %s21
      %s266 = sadd.s32 %s20, %s21
      %p267 = scmp.lt.s32.totalorder %s266, 1
      %s268 = scalar_select %p267, %s266, 1
      %s269 = smul.addr %s268, 2
      %s270 = scalar_lea.vmem %s3, %s269
      %s271 = sadd.s32 %s20, %s21
      %p272 = scmp.eq.s32.totalorder %s22, 0
      // Predicated region
      $region29: #{cross_entropy_pallas.1} parent=27 // pred_check
        %p273 = pneg %p272
      $region30: #{cross_entropy_pallas.1} parent=27 // pred_check_branch
        %275 = sbr.rel (%p273) target = $region32
      $region31: #{cross_entropy_pallas.1} parent=27 // pred_region
        %v276 = vlaneseq
        %vm277 = vcmp.ge.s32.totalorder %v276, 0
        %vm278 = vcmp.lt.s32.totalorder %v276, 256
        %vm279 = vmand %vm277, %vm278
        %280 = vst.msk [vmem:[%s264] sm:$0x3] %vm279, 0.0
        %281 = vst.msk [vmem:[%s270] sm:$0x3] %vm279, 0.0
      $region32: #{cross_entropy_pallas.1} parent=27 // pred_fallthru
        _
      %v282 = vld [vmem:[%s246] sm:$0xff]
      %v283 = vld [vmem:[%s257] sm:$0x3]
      %285 = vst [vmem:[#allocation1] ss:$2 sm:$0xff] %v282
      %v286 = vld.sshfl [vmem:[#allocation1] sm:$0xff pattern:$0x75316420]
      %v287 = vld.sshfl [vmem:[#allocation1 + $0x8] sm:$0xff pattern:$0x75316420]
      %vm290 = vcmask 1043456
      %v291 = vsel %vm290, %v286, -inf
      %v292 = vrot.slane %v291, 4
      %v293 = vmax.f32 %v291, %v292
      %v294 = vrot.slane %v293, 2
      %v295 = vmax.f32 %v293, %v294
      %v296 = vrot.slane %v295, 1
      %v297 = vmax.f32 %v295, %v296
      %v298 = vsel %vm290, %v287, -inf
      %v299 = vrot.slane %v298, 4
      %v300 = vmax.f32 %v298, %v299
      %v301 = vrot.slane %v300, 2
      %v302 = vmax.f32 %v300, %v301
      %v303 = vrot.slane %v302, 1
      %v304 = vmax.f32 %v302, %v303
      %v307 = vrot.slane %v304, 4
      %v308 = vsel %vm290, %v297, %v307
      %v310 = vsub.f32 %v282, %v308
      %v311 = vmul.f32 %v310, 1.442695
      %v312 = vpow.pop %v311
      %314 = vst [vmem:[#allocation1] ss:$2 sm:$0xff] %v312
      %v315 = vld.sshfl [vmem:[#allocation1] sm:$0xff pattern:$0x75316420]
      %v316 = vld.sshfl [vmem:[#allocation1 + $0x8] sm:$0xff pattern:$0x75316420]
      %v319 = vsel %vm290, %v315, 0.0
      %v320 = vrot.slane %v319, 4
      %v321 = vadd.f32 %v319, %v320
      %v322 = vrot.slane %v321, 2
      %v323 = vadd.f32 %v321, %v322
      %v324 = vrot.slane %v323, 1
      %v325 = vadd.f32 %v323, %v324
      %v326 = vsel %vm290, %v316, 0.0
      %v327 = vrot.slane %v326, 4
      %v328 = vadd.f32 %v326, %v327
      %v329 = vrot.slane %v328, 2
      %v330 = vadd.f32 %v328, %v329
      %v331 = vrot.slane %v330, 1
      %v332 = vadd.f32 %v330, %v331
      %v333 = vlog2.pop %v325
      %v334 = vmul.f32 %v333, 0.6931472
      %v335 = vlog2.pop %v332
      %v336 = vmul.f32 %v335, 0.6931472
      %v337 = vadd.f32 %v297, %v334
      %v338 = vadd.f32 %v304, %v336
      %v339 = vlaneseq
      %v340 = vshrl.u32 %v339, 7
      %v341 = vperm.slane %v283, 0
      %v342 = vperm.slane %v283, 1
      %vm343 = vcmp.eq.s32.totalorder %v340, %v341
      %vm344 = vcmp.eq.s32.totalorder %v340, %v342
      %345 = vst [vmem:[#allocation1] ss:$2 sm:$0xff] %v282
      %v346 = vld.sshfl [vmem:[#allocation1] sm:$0xff pattern:$0x75316420]
      %v347 = vld.sshfl [vmem:[#allocation1 + $0x8] sm:$0xff pattern:$0x75316420]
      %v350 = vsel %vm343, %v346, 0.0
      %v351 = vsel %vm344, %v347, 0.0
      %v352 = vsel %vm290, %v350, 0.0
      %v353 = vrot.slane %v352, 4
      %v354 = vadd.f32 %v352, %v353
      %v355 = vrot.slane %v354, 2
      %v356 = vadd.f32 %v354, %v355
      %v357 = vrot.slane %v356, 1
      %v358 = vadd.f32 %v356, %v357
      %v359 = vsel %vm290, %v351, 0.0
      %v360 = vrot.slane %v359, 4
      %v361 = vadd.f32 %v359, %v360
      %v362 = vrot.slane %v361, 2
      %v363 = vadd.f32 %v361, %v362
      %v364 = vrot.slane %v363, 1
      %v365 = vadd.f32 %v363, %v364
      %v366 = vsub.f32 %v337, %v358
      %v367 = vsub.f32 %v338, %v365
      %vm368 = vcmp.ne.s32.totalorder %v283, 4294967196
      %v369 = vld [vmem:[%s264] sm:$0x3]
      %v372 = vrot.slane %v367, 7
      %vm373 = vcmask 1040384
      %v374 = vsel %vm373, %v366, %v372
      %v376 = vsel %vm368, %v374, 0.0
      %v377 = vadd.f32 %v369, %v376
      %v378 = vlaneseq
      %vm379 = vcmp.ge.s32.totalorder %v378, 0
      %vm380 = vcmp.lt.s32.totalorder %v378, 256
      %vm381 = vmand %vm379, %vm380
      %382 = vst.msk [vmem:[%s264] sm:$0x3] %vm381, %v377
      %v383 = vld [vmem:[%s270] sm:$0x3]
      %v384 = vsel %vm368, 1, 0
      %v385 = vcvt.s32.f32 %v384
      %v386 = vadd.f32 %v383, %v385
      %387 = vst.msk [vmem:[%s270] sm:$0x3] %vm381, %v386
      %s388 = sadd.s32 %s20, %s21
      %p389 = scmp.lt.s32.totalorder %s388, 1
      %s390 = scalar_select %p389, %s388, 1
      %s391 = smul.addr %s390, 2
      %s392 = scalar_lea.vmem %s2, %s391
      %s393 = sadd.s32 %s20, %s21
      %p394 = scmp.lt.s32.totalorder %s393, 1
      %s395 = scalar_select %p394, %s393, 1
      %s396 = smul.addr %s395, 2
      %s397 = scalar_lea.vmem %s3, %s396
      // Predicated region
      $region33: #{cross_entropy_pallas.1} parent=27 // pred_check
        %p398 = pneg %p114
      $region34: #{cross_entropy_pallas.1} parent=27 // pred_check_branch
        %400 = sbr.rel (%p398) target = $region36
      $region35: #{cross_entropy_pallas.1} parent=27 // pred_region
        %s401 = sadd.s32 %s20, %s21
      $region36: #{cross_entropy_pallas.1} parent=27 // pred_fallthru
        _
      // Predicated region
      $region37: #{cross_entropy_pallas.1} parent=27 // pred_check
        %p402 = pneg %p142
      $region38: #{cross_entropy_pallas.1} parent=27 // pred_check_branch
        %404 = sbr.rel (%p402) target = $region40
      $region39: #{cross_entropy_pallas.1} parent=27 // pred_region
        %s405 = sadd.s32 %s20, %s21
      $region40: #{cross_entropy_pallas.1} parent=27 // pred_fallthru
        _
    $region28: #{cross_entropy_pallas.1} parent=5 // pred_fallthru
      _
    %p406 = scmp.le.s32.totalorder 2, %s10
    // Predicated region
    $region41: #{cross_entropy_pallas.1} parent=5 // pred_check
      %p407 = pneg %p406
    $region42: #{cross_entropy_pallas.1} parent=5 // pred_check_branch
      %409 = sbr.rel (%p407) target = $region44
    $region43: #{cross_entropy_pallas.1} parent=5 // pred_region
      %s410 = ssub.s32 %s10, 2
      // Predicated region
      $region45: #{cross_entropy_pallas.1} parent=43 // pred_check
        %p411 = pneg %p120
      $region46: #{cross_entropy_pallas.1} parent=43 // pred_check_branch
        %413 = sbr.rel (%p411) target = $region48
      $region47: #{cross_entropy_pallas.1} parent=43 // pred_region
        %s414 = sadd.s32 %s23, %s24
        %p415 = scmp.lt.s32.totalorder %s414, 1
        %s416 = scalar_select %p415, %s414, 1
        %s417 = smul.addr %s416, 2
        %s418 = scalar_lea.vmem %s2, %s417
      $region48: #{cross_entropy_pallas.1} parent=43 // pred_fallthru
        _
      // Predicated region
      $region49: #{cross_entropy_pallas.1} parent=43 // pred_check
        %p419 = pneg %p148
      $region50: #{cross_entropy_pallas.1} parent=43 // pred_check_branch
        %421 = sbr.rel (%p419) target = $region52
      $region51: #{cross_entropy_pallas.1} parent=43 // pred_region
        %s422 = sadd.s32 %s23, %s24
        %p423 = scmp.lt.s32.totalorder %s422, 1
        %s424 = scalar_select %p423, %s422, 1
        %s425 = smul.addr %s424, 2
        %s426 = scalar_lea.vmem %s3, %s425
      $region52: #{cross_entropy_pallas.1} parent=43 // pred_fallthru
        _
    $region44: #{cross_entropy_pallas.1} parent=5 // pred_fallthru
      _
  $region6: #{cross_entropy_pallas.1} parent=0 // loop_footer
    %s14 = sadd.s32 1, %s10
  $region7: #{cross_entropy_pallas.1} parent=0 // loop_footer_branch
    %9 = sbr.rel target = $region3
  $region8: #{cross_entropy_pallas.1} parent=0 // loop_exit
    _

</llo_original>
